<compile_context>
chip_gen: v6e
topology: v6e:2x2x1
jax: 0.10.0
libtpu: 0.0.40
codegen_flags: <defaults>
</compile_context>

<pallas_src>
import jax
import jax.numpy as jnp
from jax.experimental import pallas as pl
from jax.experimental.pallas import tpu as pltpu


def _proto_weights_kernel(w_hbm_ref, o_hbm_ref, copy_sem):
    # Single direct HBM->HBM DMA: one read pass + one write pass, no VMEM
    # staging and no vector load/store slots consumed.
    cp = pltpu.make_async_copy(w_hbm_ref, o_hbm_ref, copy_sem)
    cp.start()
    cp.wait()


def proto_weights_forward(proto_weight: jax.Array) -> jax.Array:
    """Pallas equivalent of ProtoWeights.forward() -> returns proto_weight."""
    return pl.pallas_call(
        _proto_weights_kernel,
        out_shape=jax.ShapeDtypeStruct(proto_weight.shape, proto_weight.dtype),
        in_specs=[pl.BlockSpec(memory_space=pl.ANY)],
        out_specs=pl.BlockSpec(memory_space=pl.ANY),
        scratch_shapes=[pltpu.SemaphoreType.DMA],
    )(proto_weight)


class ProtoWeightsJax:
    """Mirror of the PyTorch ProtoWeights module (parameter container)."""

    def __init__(self, n_user_prototype: int, n_item_prototype: int, key):
        self.n_user_prototype = n_user_prototype
        self.n_item_prototype = n_item_prototype
        self.name = "ProtoWeights"
        # torch.randn equivalent: standard normal init, deterministic via key.
        self.proto_weight = jax.random.normal(
            key, (n_user_prototype, n_item_prototype), dtype=jnp.float32
        )

    def __call__(self) -> jax.Array:
        return proto_weights_forward(self.proto_weight)


if __name__ == "__main__":
    key = jax.random.PRNGKey(0)
    # Small, lane-aligned shape (last dim a multiple of 128 keeps the DMA
    # descriptor trivially aligned; semantics are identical for any shape).
    n_user_prototype = 8
    n_item_prototype = 128

    module = ProtoWeightsJax(n_user_prototype, n_item_prototype, key)

    out = module()
    out = jax.block_until_ready(out)

    # Correctness: forward() must return the parameter exactly.
    assert out.shape == (n_user_prototype, n_item_prototype)
    assert out.dtype == jnp.float32
    assert bool(jnp.array_equal(out, module.proto_weight))

    print("KERNEL_OK")
</pallas_src>

<mosaic_0001>
module attributes {stable_mosaic.version = 11 : i64} {
  func.func @_proto_weights_kernel(%arg0: memref<8x128xf32, #tpu.memory_space<any>>, %arg1: memref<8x128xf32, #tpu.memory_space<any>>, %arg2: memref<!tpu.dma_semaphore, #tpu.memory_space<semaphore_mem>>) attributes {dimension_semantics = [], scalar_prefetch = 0 : i64, scratch_operands = 1 : i64, tpu.core_type = #tpu.core_type<tc>} {
    tpu.enqueue_dma source(%arg0 : memref<8x128xf32, #tpu.memory_space<any>>) target(%arg1 : memref<8x128xf32, #tpu.memory_space<any>>) target_semaphore(%arg2 : memref<!tpu.dma_semaphore, #tpu.memory_space<semaphore_mem>>)
    tpu.wait_dma2 semaphore(%arg2 : memref<!tpu.dma_semaphore, #tpu.memory_space<semaphore_mem>>) src(%arg0 : memref<8x128xf32, #tpu.memory_space<any>>) dst(%arg1 : memref<8x128xf32, #tpu.memory_space<any>>)
    return
  }
}

</mosaic_0001>

<llo_original>
// kernel: tpu_custom_call.1
$region0: #{tpu_custom_call.1}
  #allocation0 [shape = 'u32[]', space=smem, size = 0x4, offset = 0x4, fixed_abs, tag = 'smem constant byte address 0x4 - core index']
  #allocation1 [shape = 'u32[144,128]{1,0:T(1,128)}', space=vmem, size = 0x12000, scoped, tag = 'internal scratch']
  #allocation2 [shape = 's32[1]{0}', space=sflag, size = 0x4, scoped, tag = 'scratch operand']
  #allocation3 [shape = 's32[]', space=sflag, size = 0x4, offset = 0, fixed_abs, tag = 'sflag constant byte address 0x0 - dummy sync flag']
  #allocation4 [shape = 'u32[0]{0}', space=smem, size = 0, offset = 0, fixed_abs, tag = 'smem constant byte address 0x0 - null']
  %s0 = inlined_call_operand.hbm [shape: f32[8,128], index: 0, kind: input, shape index: {}]
  %s1 = inlined_call_operand.hbm [shape: f32[8,128], index: 1, kind: output, shape index: {}]
  %s2 = sld [smem:[#allocation0]]
  $region2: #{tpu_custom_call.1} parent=0
    _
  %s4 = ssub.s32 1, %s2
  %s5 = scalar_select 0, %s4, %s2
  %s7 = sshll.u32 1, 14
  %s8 = sxor.u32 4294967295, %s7
  %12 = dma.general %s0, 128, %s1, [#allocation2], 131072, [#allocation4], 0, 0
  %s13 = smul.u32 8, 1
  %s14 = sshll.u32 %s13, 4
  %15 = dma.done [#allocation2], %s14
  %16 = vsyncmov [#allocation2]
  %s17 = vpop.sfrf %16
  %p18 = scmp.eq.s32.totalorder %s17, 0
  %p19 = pneg %p18
  %21 = shalt.err (%p19)

</llo_original>
